<compile_context>
chip_gen: v7x
topology: tpu7x:2x2x1
jax: 0.10.0
libtpu: 0.0.40
codegen_flags: <defaults>
</compile_context>

<pallas_src>
import jax
import jax.numpy as jnp
from jax.experimental import pallas as pl
from jax.experimental.pallas import tpu as pltpu


def _round_up(a, m):
    return (a + m - 1) // m * m


def ffn_kernel(x_ref, w1_ref, b1_ref, w2_ref, b2_ref, o_ref):
    # x_ref:  (tm, dim_p)  bf16     w1_ref: (dim_p, hid_p) bf16   b1_ref: (1, hid_p) f32
    # w2_ref: (hid_p, dim_p) bf16   b2_ref: (1, dim_p) f32        o_ref:  (tm, dim_p) f32
    x = x_ref[...]
    # First GEMM on the MXU: bf16 operands, f32 accumulation.
    h = jnp.dot(x, w1_ref[...], preferred_element_type=jnp.float32)
    h = h + b1_ref[...]
    # SiLU = h * sigmoid(h); sigmoid hits the EUP, multiply on the VPU, all in f32.
    h = h * jax.nn.sigmoid(h)
    # Second GEMM: cast activations back to bf16 for the MXU, accumulate in f32.
    y = jnp.dot(h.astype(w2_ref.dtype), w2_ref[...],
                preferred_element_type=jnp.float32)
    y = y + b2_ref[...]
    o_ref[...] = y.astype(o_ref.dtype)


def feed_forward(x, w1, b1, w2, b2, *, tm=512):
    """x: (B, N, dim) f32. w1: (dim, hidden), b1: (hidden,), w2: (hidden, dim), b2: (dim,).
    Returns (B, N, dim) f32."""
    B, N, dim = x.shape
    hidden = w1.shape[1]
    M = B * N

    # Lane-dense feature dims (multiples of 128) and sublane-friendly row tile
    # (multiple of 16 for bf16 packing). Shrink tm for tiny inputs so we don't
    # pad 16 rows up to 512.
    dim_p = _round_up(dim, 128)
    hid_p = _round_up(hidden, 128)
    tm_eff = min(_round_up(tm, 16), _round_up(M, 16))
    grid_m = pl.cdiv(M, tm_eff)
    M_p = grid_m * tm_eff

    # Zero-pad. Zeros through padded hidden/feature lanes stay zero through SiLU
    # (silu(0)=0) and both matmuls; padded rows/cols are sliced off at the end.
    x2d = x.reshape(M, dim).astype(jnp.bfloat16)
    x_p = jnp.pad(x2d, ((0, M_p - M), (0, dim_p - dim)))
    w1_p = jnp.pad(w1.astype(jnp.bfloat16), ((0, dim_p - dim), (0, hid_p - hidden)))
    w2_p = jnp.pad(w2.astype(jnp.bfloat16), ((0, hid_p - hidden), (0, dim_p - dim)))
    b1_p = jnp.pad(b1.astype(jnp.float32), (0, hid_p - hidden)).reshape(1, hid_p)
    b2_p = jnp.pad(b2.astype(jnp.float32), (0, dim_p - dim)).reshape(1, dim_p)

    # Per-step VMEM footprint (double-buffered blocks) + headroom for the
    # (tm, hid_p) f32 intermediate; clamp to stay inside v7x's 64 MiB physical VMEM.
    est = (2 * tm_eff * dim_p * 2                      # x blocks (bf16)
           + 2 * tm_eff * dim_p * 4                    # out blocks (f32)
           + 2 * (dim_p * hid_p + hid_p * dim_p) * 2   # W1 + W2 (bf16)
           + 2 * (hid_p + dim_p) * 4                   # biases (f32)
           + 2 * tm_eff * hid_p * 4)                   # intermediate h (f32)
    vmem_limit = int(min(max(2 * est, 32 << 20), 56 << 20))

    cost = pl.CostEstimate(
        flops=2 * M_p * (dim_p * hid_p + hid_p * dim_p),
        transcendentals=M_p * hid_p,
        bytes_accessed=(x_p.size * 2 + w1_p.size * 2 + w2_p.size * 2
                        + b1_p.size * 4 + b2_p.size * 4 + M_p * dim_p * 4),
    )

    out = pl.pallas_call(
        ffn_kernel,
        out_shape=jax.ShapeDtypeStruct((M_p, dim_p), jnp.float32),
        grid_spec=pltpu.PrefetchScalarGridSpec(
            num_scalar_prefetch=0,
            grid=(grid_m,),
            in_specs=[
                pl.BlockSpec((tm_eff, dim_p), lambda i: (i, 0)),   # x rows
                pl.BlockSpec((dim_p, hid_p), lambda i: (0, 0)),    # W1 (resident)
                pl.BlockSpec((1, hid_p), lambda i: (0, 0)),        # b1
                pl.BlockSpec((hid_p, dim_p), lambda i: (0, 0)),    # W2 (resident)
                pl.BlockSpec((1, dim_p), lambda i: (0, 0)),        # b2
            ],
            out_specs=pl.BlockSpec((tm_eff, dim_p), lambda i: (i, 0)),
        ),
        compiler_params=pltpu.CompilerParams(
            dimension_semantics=("parallel",),   # row axis shards across TCs on v7x
            vmem_limit_bytes=vmem_limit,
        ),
        cost_estimate=cost,
    )(x_p, w1_p, b1_p, w2_p, b2_p)

    return out[:M, :dim].reshape(B, N, dim)


def feed_forward_ref(x, w1, b1, w2, b2):
    h = jnp.dot(x, w1) + b1
    h = h * jax.nn.sigmoid(h)
    return jnp.dot(h, w2) + b2


if __name__ == "__main__":
    # Small shapes consistent with the module: dim=16, hidden_dim=32, batch=2, tokens=8.
    B, N, dim, hidden = 2, 8, 16, 32

    key = jax.random.PRNGKey(0)
    kx, kw1, kb1, kw2, kb2 = jax.random.split(key, 5)

    x = jax.random.normal(kx, (B, N, dim), dtype=jnp.float32)
    # Deterministic parameter init (stored as (in, out) == PyTorch W^T).
    w1 = jax.random.normal(kw1, (dim, hidden), dtype=jnp.float32) * 0.1
    b1 = jax.random.normal(kb1, (hidden,), dtype=jnp.float32) * 0.1
    w2 = jax.random.normal(kw2, (hidden, dim), dtype=jnp.float32) * 0.1
    b2 = jax.random.normal(kb2, (dim,), dtype=jnp.float32) * 0.1

    y = feed_forward(x, w1, b1, w2, b2)
    y = jax.block_until_ready(y)

    y_ref = feed_forward_ref(x, w1, b1, w2, b2)
    # bf16 matmul operands (f32 accumulation) -> looser tolerance than pure f32.
    assert jnp.allclose(y, y_ref, atol=2e-2, rtol=2e-2), "mismatch vs reference"

    print("KERNEL_OK")
</pallas_src>

<mosaic_0001>
module attributes {stable_mosaic.version = 11 : i64} {
  func.func @ffn_kernel(%arg0: i32, %arg1: memref<16x128xbf16, #tpu.memory_space<vmem>>, %arg2: memref<128x128xbf16, #tpu.memory_space<vmem>>, %arg3: memref<1x128xf32, #tpu.memory_space<vmem>>, %arg4: memref<128x128xbf16, #tpu.memory_space<vmem>>, %arg5: memref<1x128xf32, #tpu.memory_space<vmem>>, %arg6: memref<16x128xf32, #tpu.memory_space<vmem>>) attributes {dimension_semantics = [#tpu.dimension_semantics<parallel>], iteration_bounds = array<i64: 1>, scalar_prefetch = 0 : i64, scratch_operands = 0 : i64, tpu.core_type = #tpu.core_type<tc>, window_params = [{transform_indices = @transform_0, window_bounds = array<i64: 16, 128>}, {pipeline_mode = #tpu.pipeline_mode<synchronous>, transform_indices = @transform_1, window_bounds = array<i64: 128, 128>}, {pipeline_mode = #tpu.pipeline_mode<synchronous>, transform_indices = @transform_2, window_bounds = array<i64: 1, 128>}, {pipeline_mode = #tpu.pipeline_mode<synchronous>, transform_indices = @transform_3, window_bounds = array<i64: 128, 128>}, {pipeline_mode = #tpu.pipeline_mode<synchronous>, transform_indices = @transform_4, window_bounds = array<i64: 1, 128>}, {transform_indices = @transform_5, window_bounds = array<i64: 16, 128>}]} {
    %c0 = arith.constant 0 : index
    %c0_0 = arith.constant 0 : index
    %0 = vector.load %arg1[%c0, %c0_0] : memref<16x128xbf16, #tpu.memory_space<vmem>>, vector<16x128xbf16>
    %c0_1 = arith.constant 0 : index
    %c0_2 = arith.constant 0 : index
    %1 = vector.load %arg2[%c0_1, %c0_2] : memref<128x128xbf16, #tpu.memory_space<vmem>>, vector<128x128xbf16>
    %cst = arith.constant dense<0.000000e+00> : vector<16x128xf32>
    %2 = tpu.matmul %0, %1, %cst {dimension_numbers = #tpu.dot_dimension_numbers<[1], [0], [0], [1], [0, 0, 1, 1], [], []>} : vector<16x128xbf16>, vector<128x128xbf16>, vector<16x128xf32> -> vector<16x128xf32>
    %c0_3 = arith.constant 0 : index
    %c0_4 = arith.constant 0 : index
    %3 = vector.load %arg3[%c0_3, %c0_4] : memref<1x128xf32, #tpu.memory_space<vmem>>, vector<1x128xf32>
    %4 = vector.broadcast %3 : vector<1x128xf32> to vector<16x128xf32>
    %5 = arith.addf %2, %4 : vector<16x128xf32>
    %6 = arith.negf %5 : vector<16x128xf32>
    %7 = math.exp %6 : vector<16x128xf32>
    %cst_5 = arith.constant 1.000000e+00 : f32
    %8 = vector.broadcast %cst_5 : f32 to vector<16x128xf32>
    %9 = arith.addf %8, %7 : vector<16x128xf32>
    %10 = arith.divf %8, %9 : vector<16x128xf32>
    %11 = arith.mulf %5, %10 : vector<16x128xf32>
    %12 = arith.truncf %11 : vector<16x128xf32> to vector<16x128xbf16>
    %c0_6 = arith.constant 0 : index
    %c0_7 = arith.constant 0 : index
    %13 = vector.load %arg4[%c0_6, %c0_7] : memref<128x128xbf16, #tpu.memory_space<vmem>>, vector<128x128xbf16>
    %cst_8 = arith.constant dense<0.000000e+00> : vector<16x128xf32>
    %14 = tpu.matmul %12, %13, %cst_8 {dimension_numbers = #tpu.dot_dimension_numbers<[1], [0], [0], [1], [0, 0, 1, 1], [], []>} : vector<16x128xbf16>, vector<128x128xbf16>, vector<16x128xf32> -> vector<16x128xf32>
    %c0_9 = arith.constant 0 : index
    %c0_10 = arith.constant 0 : index
    %15 = vector.load %arg5[%c0_9, %c0_10] : memref<1x128xf32, #tpu.memory_space<vmem>>, vector<1x128xf32>
    %16 = vector.broadcast %15 : vector<1x128xf32> to vector<16x128xf32>
    %17 = arith.addf %14, %16 : vector<16x128xf32>
    %c0_11 = arith.constant 0 : index
    %c0_12 = arith.constant 0 : index
    %18 = vector.load %arg6[%c0_11, %c0_12] : memref<16x128xf32, #tpu.memory_space<vmem>>, vector<16x128xf32>
    tpu.vector_store %arg6[%c0_11, %c0_12], %17 {strides = array<i32>} : memref<16x128xf32, #tpu.memory_space<vmem>>, vector<16x128xf32>,
    return
  }
  func.func @transform_0(%arg0: i32) -> (i32, i32) {
    %c0_i32 = arith.constant 0 : i32
    %c0_i32_0 = arith.constant 0 : i32
    return %arg0, %c0_i32 : i32, i32
  }
  func.func @transform_1(%arg0: i32) -> (i32, i32) {
    %c0_i32 = arith.constant 0 : i32
    %c0_i32_0 = arith.constant 0 : i32
    %c0_i32_1 = arith.constant 0 : i32
    return %c0_i32, %c0_i32_0 : i32, i32
  }
  func.func @transform_2(%arg0: i32) -> (i32, i32) {
    %c0_i32 = arith.constant 0 : i32
    %c0_i32_0 = arith.constant 0 : i32
    %c0_i32_1 = arith.constant 0 : i32
    return %c0_i32, %c0_i32_0 : i32, i32
  }
  func.func @transform_3(%arg0: i32) -> (i32, i32) {
    %c0_i32 = arith.constant 0 : i32
    %c0_i32_0 = arith.constant 0 : i32
    %c0_i32_1 = arith.constant 0 : i32
    return %c0_i32, %c0_i32_0 : i32, i32
  }
  func.func @transform_4(%arg0: i32) -> (i32, i32) {
    %c0_i32 = arith.constant 0 : i32
    %c0_i32_0 = arith.constant 0 : i32
    %c0_i32_1 = arith.constant 0 : i32
    return %c0_i32, %c0_i32_0 : i32, i32
  }
  func.func @transform_5(%arg0: i32) -> (i32, i32) {
    %c0_i32 = arith.constant 0 : i32
    %c0_i32_0 = arith.constant 0 : i32
    return %arg0, %c0_i32 : i32, i32
  }
}

</mosaic_0001>

<llo_original>
// kernel: tpu_custom_call.1
$region0: #{tpu_custom_call.1}
  #allocation0 [shape = 'u32[]', space=smem, size = 0x4, offset = 0x4, fixed_abs, tag = 'smem constant byte address 0x4 - core index']
  #allocation1 [shape = 'u32[144,128]{1,0:T(1,128)}', space=vmem, size = 0x12000, scoped, tag = 'internal scratch']
  %s0 = inlined_call_operand.hbm [shape: bf16[16,128], index: 0, kind: input, shape index: {}]
  %s1 = inlined_call_operand.hbm [shape: bf16[128,128], index: 1, kind: input, shape index: {}]
  %s2 = inlined_call_operand.vmem [shape: f32[1,128], index: 2, kind: input, shape index: {}]
  %s3 = inlined_call_operand.hbm [shape: bf16[128,128], index: 3, kind: input, shape index: {}]
  %s4 = inlined_call_operand.vmem [shape: f32[1,128], index: 4, kind: input, shape index: {}]
  %s5 = inlined_call_operand.hbm [shape: f32[16,128], index: 5, kind: output, shape index: {}]
  %s6 = sld [smem:[#allocation0]]
  $region42: #{tpu_custom_call.1} parent=0
    _
  %s8 = ssub.s32 1, %s6
  %s9 = scalar_select 0, %s8, %s6
  $region1: #{tpu_custom_call.1} parent=0
    #allocation2 [shape = 'u8[4096]{0}', space=vmem, size = 0x1000, scoped, tag = 'input window, operand 0, single buffered']
    #allocation3 [shape = 's32[1]{0}', space=sflag, size = 0x4, scoped, tag = 'scoped memory for tpu_custom_call.1']
    #allocation4 [shape = 's32[1]{0}', space=sflag, size = 0x4, scoped, tag = 'scoped memory for tpu_custom_call.1']
    #allocation5 [shape = 'u8[32768]{0}', space=vmem, size = 0x8000, scoped, tag = 'input window, operand 1, single buffered']
    #allocation6 [shape = 's32[1]{0}', space=sflag, size = 0x4, scoped, tag = 'scoped memory for tpu_custom_call.1']
    #allocation7 [shape = 'u8[32768]{0}', space=vmem, size = 0x8000, scoped, tag = 'input window, operand 3, single buffered']
    #allocation8 [shape = 'u8[8192]{0}', space=vmem, size = 0x2000, scoped, tag = 'output window, operand 0, single buffered']
    %10 = vsyncpa [#allocation3], 0
    %11 = vsyncpa [#allocation6], 0
    %12 = vsyncpa [#allocation4], 0
    // Predicated region
    $region2: #{tpu_custom_call.1} parent=1 // pred_check
      _
    $region3: #{tpu_custom_call.1} parent=1 // pred_check_branch
      %14 = sbr.rel (0) target = $region5
    $region4: #{tpu_custom_call.1} parent=1 // pred_region
      %s16 = ssub.s32 128, 128
      %17 = vsyncadd [#allocation3], %s16
      %s18 = sshll.u32 [#allocation2], 4
      %s19 = int_to_ptr.vmem [resolvable:$true] %s18
      %24 = dma.hbm_to_vmem [thread:$0]  %s0, 128, %s19, [#allocation3], 64, 64, 4
    $region5: #{tpu_custom_call.1} parent=1 // pred_fallthru
      _
    // Predicated region
    $region6: #{tpu_custom_call.1} parent=1 // pred_check
      _
    $region7: #{tpu_custom_call.1} parent=1 // pred_check_branch
      %26 = sbr.rel (0) target = $region9
    $region8: #{tpu_custom_call.1} parent=1 // pred_region
      %s28 = ssub.s32 1024, 1024
      %29 = vsyncadd [#allocation6], %s28
      %s30 = sshll.u32 [#allocation5], 4
      %s31 = int_to_ptr.vmem [resolvable:$true] %s30
      %36 = dma.hbm_to_vmem [thread:$0]  %s1, 1024, %s31, [#allocation6], 64, 64, 4
    $region9: #{tpu_custom_call.1} parent=1 // pred_fallthru
      _
    // Predicated region
    $region10: #{tpu_custom_call.1} parent=1 // pred_check
      _
    $region11: #{tpu_custom_call.1} parent=1 // pred_check_branch
      %38 = sbr.rel (0) target = $region13
    $region12: #{tpu_custom_call.1} parent=1 // pred_region
      _
    $region13: #{tpu_custom_call.1} parent=1 // pred_fallthru
      _
    // Predicated region
    $region14: #{tpu_custom_call.1} parent=1 // pred_check
      _
    $region15: #{tpu_custom_call.1} parent=1 // pred_check_branch
      %40 = sbr.rel (0) target = $region17
    $region16: #{tpu_custom_call.1} parent=1 // pred_region
      %s42 = ssub.s32 1024, 1024
      %43 = vsyncadd [#allocation6], %s42
      %s44 = sshll.u32 [#allocation7], 4
      %s45 = int_to_ptr.vmem [resolvable:$true] %s44
      %50 = dma.hbm_to_vmem [thread:$0]  %s3, 1024, %s45, [#allocation6], 64, 64, 4
    $region17: #{tpu_custom_call.1} parent=1 // pred_fallthru
      _
    // Predicated region
    $region18: #{tpu_custom_call.1} parent=1 // pred_check
      _
    $region19: #{tpu_custom_call.1} parent=1 // pred_check_branch
      %52 = sbr.rel (0) target = $region21
    $region20: #{tpu_custom_call.1} parent=1 // pred_region
      _
    $region21: #{tpu_custom_call.1} parent=1 // pred_fallthru
      _
    // Predicated region
    $region22: #{tpu_custom_call.1} parent=1 // pred_check
      _
    $region23: #{tpu_custom_call.1} parent=1 // pred_check_branch
      %54 = sbr.rel (0) target = $region25
    $region24: #{tpu_custom_call.1} parent=1 // pred_region
      %55 = dma.done [#allocation3], 128
    $region25: #{tpu_custom_call.1} parent=1 // pred_fallthru
      _
    // Predicated region
    $region26: #{tpu_custom_call.1} parent=1 // pred_check
      _
    $region27: #{tpu_custom_call.1} parent=1 // pred_check_branch
      %57 = sbr.rel (0) target = $region29
    $region28: #{tpu_custom_call.1} parent=1 // pred_region
      %58 = dma.done [#allocation6], 1024
    $region29: #{tpu_custom_call.1} parent=1 // pred_fallthru
      _
    // Predicated region
    $region30: #{tpu_custom_call.1} parent=1 // pred_check
      _
    $region31: #{tpu_custom_call.1} parent=1 // pred_check_branch
      %60 = sbr.rel (0) target = $region33
    $region32: #{tpu_custom_call.1} parent=1 // pred_region
      %61 = dma.done [#allocation6], 1024
    $region33: #{tpu_custom_call.1} parent=1 // pred_fallthru
      _
    %v63 = vld [vmem:[#allocation2] sm:$0xf]
    %v64 = vld [vmem:[#allocation2 + $0x4] sm:$0xf]
    %v65 = vld [vmem:[#allocation5] sm:$0xf]
    %v66 = vld [vmem:[#allocation5 + $0x4] sm:$0xf]
    %v67 = vld [vmem:[#allocation5 + $0x8] sm:$0xf]
    %v68 = vld [vmem:[#allocation5 + $0xc] sm:$0xf]
    %v69 = vld [vmem:[#allocation5 + $0x10] sm:$0xf]
    %v70 = vld [vmem:[#allocation5 + $0x14] sm:$0xf]
    %v71 = vld [vmem:[#allocation5 + $0x18] sm:$0xf]
    %v72 = vld [vmem:[#allocation5 + $0x1c] sm:$0xf]
    %v73 = vld [vmem:[#allocation5 + $0x20] sm:$0xf]
    %v74 = vld [vmem:[#allocation5 + $0x24] sm:$0xf]
    %v75 = vld [vmem:[#allocation5 + $0x28] sm:$0xf]
    %v76 = vld [vmem:[#allocation5 + $0x2c] sm:$0xf]
    %v77 = vld [vmem:[#allocation5 + $0x30] sm:$0xf]
    %v78 = vld [vmem:[#allocation5 + $0x34] sm:$0xf]
    %v79 = vld [vmem:[#allocation5 + $0x38] sm:$0xf]
    %v80 = vld [vmem:[#allocation5 + $0x3c] sm:$0xf]
    %v81 = vld [vmem:[%s2] sm:$0x1]
    %v83 = vlaneseq
    %v84 = vshrl.u32 %v83, 7
    %v85 = vsub.s32 0, %v84
    %v86 = vrot.slane %v81, %v85
    %v90 = vunpack.c.l.b16 %v63
    %v91 = vunpack.c.l.b16 %v64
    %v92 = vpack.c.b16 %v91, %v90
    %v110 = vunpack.c.l.b16 %v65
    %v111 = vunpack.c.l.b16 %v66
    %v112 = vunpack.c.l.b16 %v67
    %v113 = vunpack.c.l.b16 %v68
    %v114 = vunpack.c.l.b16 %v69
    %v115 = vunpack.c.l.b16 %v70
    %v116 = vunpack.c.l.b16 %v71
    %v117 = vunpack.c.l.b16 %v72
    %v118 = vunpack.c.l.b16 %v73
    %v119 = vunpack.c.l.b16 %v74
    %v120 = vunpack.c.l.b16 %v75
    %v121 = vunpack.c.l.b16 %v76
    %v122 = vunpack.c.l.b16 %v77
    %v123 = vunpack.c.l.b16 %v78
    %v124 = vunpack.c.l.b16 %v79
    %v125 = vunpack.c.l.b16 %v80
    %v126 = vpack.c.b16 %v111, %v110
    %v127 = vpack.c.b16 %v113, %v112
    %v128 = vpack.c.b16 %v115, %v114
    %v129 = vpack.c.b16 %v117, %v116
    %v130 = vpack.c.b16 %v119, %v118
    %v131 = vpack.c.b16 %v121, %v120
    %v132 = vpack.c.b16 %v123, %v122
    %v133 = vpack.c.b16 %v125, %v124
    %142 = vmatprep.subr.bf16.mxu0 0
    %143 = vmatpush1.bf16.msra.mxu0 %v126
    %144 = vmatprep.subr.bf16.mxu0 0
    %145 = vmatpush1.bf16.msra.mxu0 %v127
    %146 = vmatprep.subr.bf16.mxu0 0
    %147 = vmatpush1.bf16.msra.mxu0 %v128
    %148 = vmatprep.subr.bf16.mxu0 0
    %149 = vmatpush1.bf16.msra.mxu0 %v129
    %150 = vmatprep.subr.bf16.mxu0 0
    %151 = vmatpush1.bf16.msra.mxu0 %v130
    %152 = vmatprep.subr.bf16.mxu0 0
    %153 = vmatpush1.bf16.msra.mxu0 %v131
    %154 = vmatprep.subr.bf16.mxu0 0
    %155 = vmatpush1.bf16.msra.mxu0 %v132
    %156 = vmatprep.subr.bf16.mxu0 0
    %157 = vmatpush1.bf16.msra.mxu0 %v133
    %158 = vmatprep.subr.bf16.mxu0 0
    %159 = vmatpush1.bf16.msra.mxu0 0
    %160 = vmatprep.subr.bf16.mxu0 0
    %161 = vmatpush1.bf16.msra.mxu0 0
    %162 = vmatprep.subr.bf16.mxu0 0
    %163 = vmatpush1.bf16.msra.mxu0 0
    %164 = vmatprep.subr.bf16.mxu0 0
    %165 = vmatpush1.bf16.msra.mxu0 0
    %166 = vmatprep.subr.bf16.mxu0 0
    %167 = vmatpush1.bf16.msra.mxu0 0
    %168 = vmatprep.subr.bf16.mxu0 0
    %169 = vmatpush1.bf16.msra.mxu0 0
    %170 = vmatprep.subr.bf16.mxu0 0
    %171 = vmatpush1.bf16.msra.mxu0 0
    %172 = vmatprep.subr.bf16.mxu0 0
    %173 = vmatpush1.bf16.msra.mxu0 0
    %174 = vmatprep.mubr.bf16.mxu0 0
    %175 = vmatmul.mubr.bf16.gmra.mrb[0].mxu0 %v92
    %v176 = vpop.f32.mrb[0].mxu0
    %v177 = vadd.f32 %v86, %v176
    %v178 = vpop.f32.mrb[0].mxu0
    %v179 = vpop.f32.mrb[0].mxu0
    %v180 = vadd.f32 %v86, %v179
    %v181 = vpop.f32.mrb[0].mxu0
    %182 = vdwg.mxu0
    %v183 = vxor.u32 %v177, 2147483648
    %v184 = vxor.u32 %v180, 2147483648
    %v185 = vmul.f32 %v183, 1.442695
    %v186 = vpow.pop %v185
    %v187 = vmul.f32 %v184, 1.442695
    %v188 = vpow.pop %v187
    %v189 = vadd.f32 %v186, 1.0
    %v190 = vadd.f32 %v188, 1.0
    %v191 = vrcp.pop %v189
    %v192 = vmul.f32 1.0, %v191
    %v193 = vrcp.pop %v190
    %v194 = vmul.f32 1.0, %v193
    %v195 = vmul.f32 %v177, %v192
    %v196 = vmul.f32 %v180, %v194
    %v197 = vpack.c.bf16 %v196, %v195
    %v198 = vld [vmem:[#allocation7] sm:$0xf]
    %v199 = vld [vmem:[#allocation7 + $0x4] sm:$0xf]
    %v200 = vld [vmem:[#allocation7 + $0x8] sm:$0xf]
    %v201 = vld [vmem:[#allocation7 + $0xc] sm:$0xf]
    %v202 = vld [vmem:[#allocation7 + $0x10] sm:$0xf]
    %v203 = vld [vmem:[#allocation7 + $0x14] sm:$0xf]
    %v204 = vld [vmem:[#allocation7 + $0x18] sm:$0xf]
    %v205 = vld [vmem:[#allocation7 + $0x1c] sm:$0xf]
    %v206 = vld [vmem:[#allocation7 + $0x20] sm:$0xf]
    %v207 = vld [vmem:[#allocation7 + $0x24] sm:$0xf]
    %v208 = vld [vmem:[#allocation7 + $0x28] sm:$0xf]
    %v209 = vld [vmem:[#allocation7 + $0x2c] sm:$0xf]
    %v210 = vld [vmem:[#allocation7 + $0x30] sm:$0xf]
    %v211 = vld [vmem:[#allocation7 + $0x34] sm:$0xf]
    %v212 = vld [vmem:[#allocation7 + $0x38] sm:$0xf]
    %v213 = vld [vmem:[#allocation7 + $0x3c] sm:$0xf]
    %v214 = vld [vmem:[%s4] sm:$0x1]
    %v216 = vlaneseq
    %v217 = vshrl.u32 %v216, 7
    %v218 = vsub.s32 0, %v217
    %v219 = vrot.slane %v214, %v218
    %v237 = vunpack.c.l.b16 %v198
    %v238 = vunpack.c.l.b16 %v199
    %v239 = vunpack.c.l.b16 %v200
    %v240 = vunpack.c.l.b16 %v201
    %v241 = vunpack.c.l.b16 %v202
    %v242 = vunpack.c.l.b16 %v203
    %v243 = vunpack.c.l.b16 %v204
    %v244 = vunpack.c.l.b16 %v205
    %v245 = vunpack.c.l.b16 %v206
    %v246 = vunpack.c.l.b16 %v207
    %v247 = vunpack.c.l.b16 %v208
    %v248 = vunpack.c.l.b16 %v209
    %v249 = vunpack.c.l.b16 %v210
    %v250 = vunpack.c.l.b16 %v211
    %v251 = vunpack.c.l.b16 %v212
    %v252 = vunpack.c.l.b16 %v213
    %v253 = vpack.c.b16 %v238, %v237
    %v254 = vpack.c.b16 %v240, %v239
    %v255 = vpack.c.b16 %v242, %v241
    %v256 = vpack.c.b16 %v244, %v243
    %v257 = vpack.c.b16 %v246, %v245
    %v258 = vpack.c.b16 %v248, %v247
    %v259 = vpack.c.b16 %v250, %v249
    %v260 = vpack.c.b16 %v252, %v251
    %269 = vmatprep.subr.bf16.mxu0 0
    %270 = vmatpush1.bf16.msra.mxu0 %v253
    %271 = vmatprep.subr.bf16.mxu0 0
    %272 = vmatpush1.bf16.msra.mxu0 %v254
    %273 = vmatprep.subr.bf16.mxu0 0
    %274 = vmatpush1.bf16.msra.mxu0 %v255
    %275 = vmatprep.subr.bf16.mxu0 0
    %276 = vmatpush1.bf16.msra.mxu0 %v256
    %277 = vmatprep.subr.bf16.mxu0 0
    %278 = vmatpush1.bf16.msra.mxu0 %v257
    %279 = vmatprep.subr.bf16.mxu0 0
    %280 = vmatpush1.bf16.msra.mxu0 %v258
    %281 = vmatprep.subr.bf16.mxu0 0
    %282 = vmatpush1.bf16.msra.mxu0 %v259
    %283 = vmatprep.subr.bf16.mxu0 0
    %284 = vmatpush1.bf16.msra.mxu0 %v260
    %285 = vmatprep.subr.bf16.mxu0 0
    %286 = vmatpush1.bf16.msra.mxu0 0
    %287 = vmatprep.subr.bf16.mxu0 0
    %288 = vmatpush1.bf16.msra.mxu0 0
    %289 = vmatprep.subr.bf16.mxu0 0
    %290 = vmatpush1.bf16.msra.mxu0 0
    %291 = vmatprep.subr.bf16.mxu0 0
    %292 = vmatpush1.bf16.msra.mxu0 0
    %293 = vmatprep.subr.bf16.mxu0 0
    %294 = vmatpush1.bf16.msra.mxu0 0
    %295 = vmatprep.subr.bf16.mxu0 0
    %296 = vmatpush1.bf16.msra.mxu0 0
    %297 = vmatprep.subr.bf16.mxu0 0
    %298 = vmatpush1.bf16.msra.mxu0 0
    %299 = vmatprep.subr.bf16.mxu0 0
    %300 = vmatpush1.bf16.msra.mxu0 0
    %301 = vmatprep.mubr.bf16.mxu0 0
    %302 = vmatmul.mubr.bf16.gmra.mrb[0].mxu0 %v197
    %v303 = vpop.f32.mrb[0].mxu0
    %v304 = vadd.f32 %v219, %v303
    %v305 = vpop.f32.mrb[0].mxu0
    %v306 = vpop.f32.mrb[0].mxu0
    %v307 = vadd.f32 %v219, %v306
    %v308 = vpop.f32.mrb[0].mxu0
    %309 = vdwg.mxu0
    %310 = vst [vmem:[#allocation8] sm:$0xff] %v304
    %311 = vst [vmem:[#allocation8 + $0x8] sm:$0xff] %v307
    // Predicated region
    $region34: #{tpu_custom_call.1} parent=1 // pred_check
      _
    $region35: #{tpu_custom_call.1} parent=1 // pred_check_branch
      %313 = sbr.rel (0) target = $region37
    $region36: #{tpu_custom_call.1} parent=1 // pred_region
      %s315 = ssub.s32 256, 256
      %316 = vsyncadd [#allocation4], %s315
      %s317 = sshll.u32 [#allocation8], 4
      %s318 = int_to_ptr.vmem [resolvable:$true] %s317
      %323 = dma.vmem_to_hbm [thread:$0]  %s318, 256, %s5, [#allocation4], 128, 128, 8
    $region37: #{tpu_custom_call.1} parent=1 // pred_fallthru
      _
    // Predicated region
    $region38: #{tpu_custom_call.1} parent=1 // pred_check
      _
    $region39: #{tpu_custom_call.1} parent=1 // pred_check_branch
      %325 = sbr.rel (0) target = $region41
    $region40: #{tpu_custom_call.1} parent=1 // pred_region
      %326 = dma.done [#allocation4], 256
    $region41: #{tpu_custom_call.1} parent=1 // pred_fallthru
      _
    %327 = vsyncpa [#allocation3], 1
    %328 = vsyncpa [#allocation6], 1
    %329 = vsyncpa [#allocation4], 1

</llo_original>
